<compile_context>
chip_gen: v5e
topology: v5e:2x2
jax: 0.10.0
libtpu: 0.0.40
codegen_flags: <defaults>
</compile_context>

<pallas_src>
import jax
import jax.numpy as jnp
from jax.experimental import pallas as pl
from jax.experimental.pallas import tpu as pltpu

EPS = 1e-10

_LANE = 128
_SUBLANE = 8
# Budget for the pipelined buffers: 2x input tile + 2x output tile.
_TILE_BUDGET_BYTES = 16 * 1024 * 1024
# Explicit scoped-VMEM limit (v5e default is only 16 MiB; v7x physical is 64 MiB).
_VMEM_LIMIT_BYTES = 32 * 1024 * 1024
# Aim for at least ~1 MiB of input per grid step (amortizes ~0.35 us step cost).
_TARGET_STEP_BYTES = 1 * 1024 * 1024


def _round_up(v, m):
    return ((v + m - 1) // m) * m


def _cdiv(a, b):
    return (a + b - 1) // b


def _l2norm_kernel(x_ref, w_ref, o_ref):
    # x_ref/o_ref: (Bn, C, T) block; w_ref: (C, 1).
    x = x_ref[...]                                           # (Bn, C, T)
    sq_sum = jnp.sum(x * x, axis=1, keepdims=True)           # (Bn, 1, T)
    inv = pl.reciprocal(jnp.sqrt(sq_sum) + EPS, approx=False)
    # (C, 1) broadcasts as (1, C, 1) against (Bn, C, T).
    o_ref[...] = x * inv * w_ref[...]


def _pick_tiles(N, C, HW):
    """Choose (Bn, T): batch elements per step and lane-tile size (mult of 128)."""
    c_pad = _round_up(C, _SUBLANE)
    bytes_per_lane = c_pad * 4                       # f32 column of padded C
    hw128 = _round_up(HW, _LANE)

    # Largest lane tile that keeps 2x(in+out) buffers within the budget.
    max_t = (_TILE_BUDGET_BYTES // (4 * bytes_per_lane) // _LANE) * _LANE
    T = max(_LANE, min(hw128, max_t))

    # Block batch elements per step until the input tile reaches ~1 MiB.
    tile_bytes = bytes_per_lane * T                  # per single batch element
    Bn = 1
    for cand in range(1, N + 1):
        if N % cand:
            continue
        if 4 * cand * tile_bytes > _TILE_BUDGET_BYTES:
            break
        Bn = cand
        if cand * tile_bytes >= _TARGET_STEP_BYTES:
            break

    # v7x megacore: make sure there are >= 2 grid steps when the shape allows.
    if _cdiv(N, Bn) * _cdiv(HW, T) == 1:
        if T > _LANE:
            T = max(_LANE, _round_up(T // 2, _LANE))
        elif Bn > 1:
            Bn = max(d for d in range(1, Bn) if N % d == 0)
    return Bn, T


def l2norm(x_nchw, weight):
    """x_nchw: (N, C, H, W) float32, weight: (C,) float32 -> (N, C, H, W)."""
    N, C, H, W = x_nchw.shape
    HW = H * W
    x_flat = x_nchw.reshape(N, C, HW)
    w2d = weight.reshape(C, 1).astype(x_nchw.dtype)

    Bn, T = _pick_tiles(N, C, HW)
    grid = (_cdiv(N, Bn), _cdiv(HW, T))

    out_flat = pl.pallas_call(
        _l2norm_kernel,
        out_shape=jax.ShapeDtypeStruct((N, C, HW), x_nchw.dtype),
        grid_spec=pltpu.PrefetchScalarGridSpec(
            num_scalar_prefetch=0,
            grid=grid,
            in_specs=[
                pl.BlockSpec((Bn, C, T), lambda n, t: (n, 0, t)),
                pl.BlockSpec((C, 1), lambda n, t: (0, 0)),
            ],
            out_specs=pl.BlockSpec((Bn, C, T), lambda n, t: (n, 0, t)),
        ),
        compiler_params=pltpu.CompilerParams(
            dimension_semantics=("parallel", "parallel"),
            vmem_limit_bytes=_VMEM_LIMIT_BYTES,
        ),
    )(x_flat, w2d)

    return out_flat.reshape(N, C, H, W)


def l2norm_reference(x, weight):
    # Pure-JAX reference mirroring the PyTorch forward.
    norm = jnp.sqrt(jnp.sum(x * x, axis=1, keepdims=True)) + EPS
    xn = x / norm
    return weight[None, :, None, None] * xn


if __name__ == "__main__":
    # Module config: L2Norm(n_channels=4, scale=20.0)
    n_channels = 4
    scale = 20.0

    # Deterministic parameter init (init.constant(self.weight, self.gamma)):
    weight = jnp.full((n_channels,), scale, dtype=jnp.float32)

    key = jax.random.PRNGKey(0)
    x = jax.random.normal(key, (2, n_channels, 16, 16), dtype=jnp.float32)

    out = l2norm(x, weight)
    out = jax.block_until_ready(out)

    ref = l2norm_reference(x, weight)
    assert out.shape == x.shape
    assert jnp.allclose(out, ref, atol=1e-5, rtol=1e-5), "mismatch vs reference"

    print("KERNEL_OK")
</pallas_src>

<mosaic_0001>
module attributes {stable_mosaic.version = 11 : i64} {
  func.func @_l2norm_kernel(%arg0: i32, %arg1: i32, %arg2: memref<2x4x128xf32, #tpu.memory_space<vmem>>, %arg3: memref<4x1xf32, #tpu.memory_space<vmem>>, %arg4: memref<2x4x128xf32, #tpu.memory_space<vmem>>) attributes {dimension_semantics = [#tpu.dimension_semantics<parallel>, #tpu.dimension_semantics<parallel>], iteration_bounds = array<i64: 1, 2>, scalar_prefetch = 0 : i64, scratch_operands = 0 : i64, tpu.core_type = #tpu.core_type<tc>, window_params = [{transform_indices = @transform_0, window_bounds = array<i64: 2, 4, 128>}, {pipeline_mode = #tpu.pipeline_mode<synchronous>, transform_indices = @transform_1, window_bounds = array<i64: 4, 1>}, {transform_indices = @transform_2, window_bounds = array<i64: 2, 4, 128>}]} {
    %c0 = arith.constant 0 : index
    %c0_0 = arith.constant 0 : index
    %c0_1 = arith.constant 0 : index
    %0 = vector.load %arg2[%c0, %c0_0, %c0_1] : memref<2x4x128xf32, #tpu.memory_space<vmem>>, vector<2x4x128xf32>
    %1 = arith.mulf %0, %0 : vector<2x4x128xf32>
    %cst = arith.constant dense<0.000000e+00> : vector<2x128xf32>
    %2 = vector.multi_reduction <add>, %1, %cst [1] : vector<2x4x128xf32> to vector<2x128xf32>
    %3 = vector.shape_cast %2 : vector<2x128xf32> to vector<2x1x128xf32>
    %4 = math.sqrt %3 : vector<2x1x128xf32>
    %cst_2 = arith.constant 1.000000e-10 : f32
    %5 = vector.broadcast %cst_2 : f32 to vector<2x1x128xf32>
    %6 = arith.addf %4, %5 : vector<2x1x128xf32>
    %7 = tpu.reciprocal %6 : vector<2x1x128xf32> -> vector<2x1x128xf32>
    %8 = vector.broadcast %7 : vector<2x1x128xf32> to vector<2x4x128xf32>
    %9 = arith.mulf %0, %8 : vector<2x4x128xf32>
    %c0_3 = arith.constant 0 : index
    %c0_4 = arith.constant 0 : index
    %10 = vector.load %arg3[%c0_3, %c0_4] : memref<4x1xf32, #tpu.memory_space<vmem>>, vector<4x1xf32>
    %11 = vector.shape_cast %10 : vector<4x1xf32> to vector<1x4x1xf32>
    %12 = vector.broadcast %11 : vector<1x4x1xf32> to vector<2x4x128xf32>
    %13 = arith.mulf %9, %12 : vector<2x4x128xf32>
    %c0_5 = arith.constant 0 : index
    %c0_6 = arith.constant 0 : index
    %c0_7 = arith.constant 0 : index
    %14 = vector.load %arg4[%c0_5, %c0_6, %c0_7] : memref<2x4x128xf32, #tpu.memory_space<vmem>>, vector<2x4x128xf32>
    tpu.vector_store %arg4[%c0_5, %c0_6, %c0_7], %13 {strides = array<i32>} : memref<2x4x128xf32, #tpu.memory_space<vmem>>, vector<2x4x128xf32>,
    return
  }
  func.func @transform_0(%arg0: i32, %arg1: i32) -> (i32, i32, i32) {
    %c0_i32 = arith.constant 0 : i32
    %c0_i32_0 = arith.constant 0 : i32
    return %arg0, %c0_i32, %arg1 : i32, i32, i32
  }
  func.func @transform_1(%arg0: i32, %arg1: i32) -> (i32, i32) {
    %c0_i32 = arith.constant 0 : i32
    %c0_i32_0 = arith.constant 0 : i32
    %c0_i32_1 = arith.constant 0 : i32
    return %c0_i32, %c0_i32_0 : i32, i32
  }
  func.func @transform_2(%arg0: i32, %arg1: i32) -> (i32, i32, i32) {
    %c0_i32 = arith.constant 0 : i32
    %c0_i32_0 = arith.constant 0 : i32
    return %arg0, %c0_i32, %arg1 : i32, i32, i32
  }
}

</mosaic_0001>

<llo_original>
// kernel: tpu_custom_call.1
$region0: #{tpu_custom_call.1}
  #allocation0 [shape = 'u32[]', space=smem, size = 0x4, offset = 0x4, fixed_abs, tag = 'smem constant byte address 0x4 - core index']
  #allocation1 [shape = 'u32[72,128]{1,0:T(1,128)}', space=vmem, size = 0x9000, scoped, tag = 'internal scratch']
  %s0 = inlined_call_operand.hbm [shape: f32[2,4,256], index: 0, kind: input, shape index: {}]
  %s1 = inlined_call_operand.vmem [shape: f32[4,1], index: 1, kind: input, shape index: {}]
  %s2 = inlined_call_operand.hbm [shape: f32[2,4,256], index: 2, kind: output, shape index: {}]
  %s3 = sld [smem:[#allocation0]]
  $region45: #{tpu_custom_call.1} parent=0
    _
  %s5 = ssub.s32 1, %s3
  %s6 = scalar_select 0, %s5, %s3
  $region1: #{tpu_custom_call.1} parent=0
    #allocation2 [shape = 'u8[8192]{0}', space=vmem, size = 0x2000, scoped, tag = 'input window, operand 0']
    #allocation3 [shape = 's32[2]{0}', space=sflag, size = 0x8, scoped, tag = 'scoped memory for tpu_custom_call.1']
    #allocation4 [shape = 's32[2]{0}', space=sflag, size = 0x8, scoped, tag = 'scoped memory for tpu_custom_call.1']
    #allocation5 [shape = 'u8[8192]{0}', space=vmem, size = 0x2000, scoped, tag = 'output window, operand 0']
    %7 = vsyncpa [#allocation3], 0
    %s8 = scalar_lea.sflag [#allocation3], 1
    %9 = vsyncpa %s8, 0
    %10 = vsyncpa [#allocation4], 0
    %s11 = scalar_lea.sflag [#allocation4], 1
    %12 = vsyncpa %s11, 0
    loop: start=0, step=1, limit=4
    $region2: #{tpu_custom_call.1} parent=1 // loop_pre_header
      _
    $region3: #{tpu_custom_call.1} parent=1 // loop_header
      %s14 = sphi 0, %s18
      %p15 = scmp.ge.s32.totalorder %s14, 4
      %s21 = sphi 0, %s33
      %s22 = sphi 0, %s29
      %s23 = sphi 0, %s21
      %s24 = sphi 0, %s22
      %s25 = sphi 0, %s23
      %s26 = sphi 0, %s24
      %s38 = sphi 0, %s40
      %s41 = sphi 0, %s38
      %s42 = sphi 0, %s41
      %s58 = sphi 0, %s42
      %s62 = sphi 0, %s62
      %s64 = sphi 0, %s62
      %s65 = sphi 0, %s64
      %s79 = sphi 0, %s65
      %s87 = sphi 0, %s89
      %s90 = sphi 0, %s87
      %s91 = sphi 0, %s90
      %s107 = sphi 0, %s91
    $region4: #{tpu_custom_call.1} parent=1 // loop_header_branch
      %17 = sbr.rel (%p15) target = $region8
    $region5: #{tpu_custom_call.1} parent=1 // loop_body
      %s19 = ssub.s32 %s14, 1
      %s20 = ssub.s32 %s14, 2
      %s27 = sadd.s32 1, %s22
      %p28 = scmp.ge.s32.totalorder %s27, 2
      %s29 = scalar_select %p28, 0, %s27
      %s30 = sadd.s32 1, %s21
      %s31 = scalar_select %p28, %s30, %s21
      %p32 = scmp.ge.s32.totalorder %s31, 1
      %s33 = scalar_select %p32, 0, %s31
      %s34 = ssub.s32 %s21, %s33
      %s35 = ssub.s32 %s22, %s29
      %s36 = sor.u32 %s34, %s35
      %p37 = scmp.eq.s32.totalorder %s36, 0
      %s39 = sadd.s32 %s38, 1
      %s40 = scalar_select %p37, %s38, %s39
      %p43 = pneg %p37
      %p44 = scmp.eq.s32.totalorder %s14, 1
      %p45 = por %p43, %p44
      %p46 = scmp.ne.s32.totalorder %s38, %s41
      %p47 = scmp.eq.s32.totalorder %s14, 0
      %p48 = por %p46, %p47
      %p49 = scmp.ne.s32.totalorder %s38, %s41
      %p50 = scmp.eq.s32.totalorder %s19, 1
      %p51 = por %p49, %p50
      %p52 = scmp.ne.s32.totalorder %s41, %s42
      %p53 = scmp.eq.s32.totalorder %s19, 0
      %p54 = por %p52, %p53
      %p55 = scmp.ne.s32.totalorder %s41, %s42
      %p56 = scmp.eq.s32.totalorder %s20, 1
      %p57 = por %p55, %p56
      %p59 = scmp.ne.s32.totalorder %s42, %s58
      %p60 = scmp.eq.s32.totalorder %s20, 0
      %p61 = por %p59, %p60
      %s63 = sadd.s32 %s62, 1
      %p66 = scmp.eq.s32.totalorder %s14, 1
      %p67 = scmp.ne.s32.totalorder %s62, %s64
      %p68 = scmp.eq.s32.totalorder %s14, 0
      %p69 = por %p67, %p68
      %p70 = scmp.ne.s32.totalorder %s62, %s64
      %p71 = scmp.eq.s32.totalorder %s19, 1
      %p72 = por %p70, %p71
      %p73 = scmp.ne.s32.totalorder %s64, %s65
      %p74 = scmp.eq.s32.totalorder %s19, 0
      %p75 = por %p73, %p74
      %p76 = scmp.ne.s32.totalorder %s64, %s65
      %p77 = scmp.eq.s32.totalorder %s20, 1
      %p78 = por %p76, %p77
      %p80 = scmp.ne.s32.totalorder %s65, %s79
      %p81 = scmp.eq.s32.totalorder %s20, 0
      %p82 = por %p80, %p81
      %s83 = ssub.s32 %s21, %s33
      %s84 = ssub.s32 %s22, %s29
      %s85 = sor.u32 %s83, %s84
      %p86 = scmp.eq.s32.totalorder %s85, 0
      %s88 = sadd.s32 %s87, 1
      %s89 = scalar_select %p86, %s87, %s88
      %p92 = pneg %p86
      %p93 = scmp.eq.s32.totalorder %s14, 1
      %p94 = por %p92, %p93
      %p95 = scmp.ne.s32.totalorder %s87, %s90
      %p96 = scmp.eq.s32.totalorder %s14, 0
      %p97 = por %p95, %p96
      %p98 = scmp.ne.s32.totalorder %s87, %s90
      %p99 = scmp.eq.s32.totalorder %s19, 1
      %p100 = por %p98, %p99
      %p101 = scmp.ne.s32.totalorder %s90, %s91
      %p102 = scmp.eq.s32.totalorder %s19, 0
      %p103 = por %p101, %p102
      %p104 = scmp.ne.s32.totalorder %s90, %s91
      %p105 = scmp.eq.s32.totalorder %s20, 1
      %p106 = por %p104, %p105
      %p108 = scmp.ne.s32.totalorder %s91, %s107
      %p109 = scmp.eq.s32.totalorder %s20, 0
      %p110 = por %p108, %p109
      %p111 = scmp.le.s32.totalorder 1, %s14
      %p112 = scmp.lt.s32.totalorder %s14, 3
      %p113 = pnand %p111, %p112
      %p114 = pneg %p113
      // Predicated region
      $region9: #{tpu_custom_call.1} parent=5 // pred_check
        _
      $region10: #{tpu_custom_call.1} parent=5 // pred_check_branch
        %116 = sbr.rel (%p113) target = $region12
      $region11: #{tpu_custom_call.1} parent=5 // pred_region
        %s117 = ssub.s32 %s14, 1
        // Predicated region
        $region13: #{tpu_custom_call.1} parent=11 // pred_check
          %p118 = pneg %p75
        $region14: #{tpu_custom_call.1} parent=11 // pred_check_branch
          %120 = sbr.rel (%p118) target = $region16
        $region15: #{tpu_custom_call.1} parent=11 // pred_region
          _
        $region16: #{tpu_custom_call.1} parent=11 // pred_fallthru
          _
      $region12: #{tpu_custom_call.1} parent=5 // pred_fallthru
        _
      %p121 = scmp.lt.s32.totalorder %s14, 2
      // Predicated region
      $region17: #{tpu_custom_call.1} parent=5 // pred_check
        %p122 = pneg %p121
      $region18: #{tpu_custom_call.1} parent=5 // pred_check_branch
        %124 = sbr.rel (%p122) target = $region20
      $region19: #{tpu_custom_call.1} parent=5 // pred_region
        // Predicated region
        $region21: #{tpu_custom_call.1} parent=19 // pred_check
          %p125 = pneg %p48
        $region22: #{tpu_custom_call.1} parent=19 // pred_check_branch
          %127 = sbr.rel (%p125) target = $region24
        $region23: #{tpu_custom_call.1} parent=19 // pred_region
          %s128 = sand.u32 %s38, 1
          %s129 = scalar_lea.sflag [#allocation3], %s128
          %s130 = sand.u32 %s38, 1
          %s131 = smul.addr %s130, 8
          %s132 = scalar_lea.vmem [#allocation2], %s131
          %s133 = smul.u32 2, %s21
          %135 = vsyncadd %s129, 0
          %s136 = smul.addr %s133, 2
          %s137 = sadd.s32 %s22, %s136
          %s138 = smul.addr %s137, 4
          %s139 = scalar_lea.hbm %s0, %s138
          %s140 = sshll.u32 %s139, 4
          %s141 = int_to_ptr.hbm [resolvable:$true] %s140
          %s142 = sshll.u32 %s132, 4
          %s143 = int_to_ptr.vmem [resolvable:$true] %s142
          %148 = dma.hbm_to_vmem [thread:$0]  %s141, 128, %s143, %s129, 128, 64, 4
        $region24: #{tpu_custom_call.1} parent=19 // pred_fallthru
          _
      $region20: #{tpu_custom_call.1} parent=5 // pred_fallthru
        _
      %p149 = scmp.le.s32.totalorder 1, %s14
      %p150 = scmp.lt.s32.totalorder %s14, 3
      %p151 = pnand %p149, %p150
      %p152 = pneg %p151
      // Predicated region
      $region25: #{tpu_custom_call.1} parent=5 // pred_check
        _
      $region26: #{tpu_custom_call.1} parent=5 // pred_check_branch
        %154 = sbr.rel (%p151) target = $region28
      $region27: #{tpu_custom_call.1} parent=5 // pred_region
        %s155 = ssub.s32 %s14, 1
        %s156 = sand.u32 %s41, 1
        %s157 = scalar_lea.sflag [#allocation3], %s156
        %s158 = sand.u32 %s41, 1
        %s159 = smul.addr %s158, 8
        %s160 = scalar_lea.vmem [#allocation2], %s159
        // Predicated region
        $region29: #{tpu_custom_call.1} parent=27 // pred_check
          %p161 = pneg %p54
        $region30: #{tpu_custom_call.1} parent=27 // pred_check_branch
          %163 = sbr.rel (%p161) target = $region32
        $region31: #{tpu_custom_call.1} parent=27 // pred_region
          %165 = dma.done %s157, 128
        $region32: #{tpu_custom_call.1} parent=27 // pred_fallthru
          _
        %s166 = sand.u32 %s41, 1
        %s167 = scalar_lea.sflag [#allocation3], %s166
        %s168 = sand.u32 %s41, 1
        %s169 = smul.addr %s168, 8
        %s170 = scalar_lea.vmem [#allocation2], %s169
        %p171 = pneg %p54
        %p172 = pneg %p51
        %p173 = pneg %p75
        %p174 = pneg %p72
        %p175 = pneg %p103
        %p176 = pneg %p100
        %s177 = sand.u32 %s90, 1
        %s178 = scalar_lea.sflag [#allocation4], %s177
        %s179 = sand.u32 %s90, 1
        %s180 = smul.addr %s179, 8
        %s181 = scalar_lea.vmem [#allocation5], %s180
        %s182 = smul.u32 2, %s23
        %s183 = smul.u32 2, %s23
        %v184 = vld [vmem:[%s160] sm:$0xf]
        %v185 = vld [vmem:[%s160 + $0x4] sm:$0xf]
        %v186 = vmul.f32 %v184, %v184
        %v187 = vmul.f32 %v185, %v185
        %vm188 = vcmask 1043456
        %v189 = vsel %vm188, %v186, 0.0
        %v190 = vrot.slane %v189, 4
        %v191 = vadd.f32 %v189, %v190
        %v192 = vrot.slane %v191, 2
        %v193 = vadd.f32 %v191, %v192
        %v194 = vrot.slane %v193, 1
        %v195 = vadd.f32 %v193, %v194
        %v196 = vsel %vm188, %v187, 0.0
        %v197 = vrot.slane %v196, 4
        %v198 = vadd.f32 %v196, %v197
        %v199 = vrot.slane %v198, 2
        %v200 = vadd.f32 %v198, %v199
        %v201 = vrot.slane %v200, 1
        %v202 = vadd.f32 %v200, %v201
        %v203 = vrsqrt.pop %v195
        %v204 = vmul.f32 %v203, %v195
        %v205 = vmul.f32 %v204, %v203
        %v206 = vmul.f32 0.5, %v205
        %v207 = vsub.f32 1.5, %v206
        %v208 = vmul.f32 %v203, %v207
        %v209 = vmul.f32 %v195, %v208
        %vm210 = vcmp.eq.f32.partialorder %v195, inf
        %v211 = vsel %vm210, %v195, %v209
        %vm212 = vcmp.eq.f32.partialorder %v195, 0.0
        %v213 = vand.u32 %v195, 2147483648
        %v214 = vsel %vm212, %v213, %v211
        %v215 = vrsqrt.pop %v202
        %v216 = vmul.f32 %v215, %v202
        %v217 = vmul.f32 %v216, %v215
        %v218 = vmul.f32 0.5, %v217
        %v219 = vsub.f32 1.5, %v218
        %v220 = vmul.f32 %v215, %v219
        %v221 = vmul.f32 %v202, %v220
        %vm222 = vcmp.eq.f32.partialorder %v202, inf
        %v223 = vsel %vm222, %v202, %v221
        %vm224 = vcmp.eq.f32.partialorder %v202, 0.0
        %v225 = vand.u32 %v202, 2147483648
        %v226 = vsel %vm224, %v225, %v223
        %v227 = vadd.f32 %v214, 1e-10
        %v228 = vadd.f32 %v226, 1e-10
        %v229 = vrcp.pop %v227
        %v230 = vmul.f32 %v227, %v229
        %v231 = vsub.f32 1.0, %v230
        %v232 = vmul.f32 %v229, %v231
        %v233 = vadd.f32 %v229, %v232
        %vm234 = vweird.f32 %v227
        %vm235 = vweird.f32 %v229
        %vm236 = vmor %vm234, %vm235
        %v237 = vsel %vm236, %v229, %v233
        %v238 = vand.u32 2147483647, %v227
        %vm239 = vcmp.eq.f32.partialorder %v238, 8.507059e+37
        %v240 = vand.u32 %v227, 2147483648
        %v241 = vor.u32 1.1754944e-38, %v240
        %v242 = vsel %vm239, %v241, %v237
        %v243 = vrcp.pop %v228
        %v244 = vmul.f32 %v228, %v243
        %v245 = vsub.f32 1.0, %v244
        %v246 = vmul.f32 %v243, %v245
        %v247 = vadd.f32 %v243, %v246
        %vm248 = vweird.f32 %v228
        %vm249 = vweird.f32 %v243
        %vm250 = vmor %vm248, %vm249
        %v251 = vsel %vm250, %v243, %v247
        %v252 = vand.u32 2147483647, %v228
        %vm253 = vcmp.eq.f32.partialorder %v252, 8.507059e+37
        %v254 = vand.u32 %v228, 2147483648
        %v255 = vor.u32 1.1754944e-38, %v254
        %v256 = vsel %vm253, %v255, %v251
        %v257 = vmul.f32 %v184, %v242
        %v258 = vmul.f32 %v185, %v256
        %v259 = vld [vmem:[%s1] sm:$0xf]
        %261 = vset.pattern.permute.xlu0 0
        %262 = vperm.xlu0 %261, %v259
        %v263 = vpop.permute.xlu0 %262
        %v265 = vmul.f32 %v257, %v263
        %v266 = vmul.f32 %v258, %v263
        %267 = vst [vmem:[%s181] sm:$0xf] %v265
        %268 = vst [vmem:[%s181 + $0x4] sm:$0xf] %v266
        %s269 = sand.u32 %s90, 1
        %s270 = scalar_lea.sflag [#allocation4], %s269
        %s271 = sand.u32 %s90, 1
        %s272 = smul.addr %s271, 8
        %s273 = scalar_lea.vmem [#allocation5], %s272
        // Predicated region
        $region33: #{tpu_custom_call.1} parent=27 // pred_check
          %p274 = pneg %p100
        $region34: #{tpu_custom_call.1} parent=27 // pred_check_branch
          %276 = sbr.rel (%p274) target = $region36
        $region35: #{tpu_custom_call.1} parent=27 // pred_region
          %s277 = smul.u32 2, %s23
          %279 = vsyncadd %s270, 0
          %s280 = smul.addr %s277, 2
          %s281 = sadd.s32 %s24, %s280
          %s282 = smul.addr %s281, 4
          %s283 = scalar_lea.hbm %s2, %s282
          %s284 = sshll.u32 %s273, 4
          %s285 = int_to_ptr.vmem [resolvable:$true] %s284
          %s286 = sshll.u32 %s283, 4
          %s287 = int_to_ptr.hbm [resolvable:$true] %s286
          %292 = dma.vmem_to_hbm [thread:$0]  %s285, 128, %s287, %s270, 64, 128, 4
        $region36: #{tpu_custom_call.1} parent=27 // pred_fallthru
          _
      $region28: #{tpu_custom_call.1} parent=5 // pred_fallthru
        _
      %p293 = scmp.le.s32.totalorder 2, %s14
      // Predicated region
      $region37: #{tpu_custom_call.1} parent=5 // pred_check
        %p294 = pneg %p293
      $region38: #{tpu_custom_call.1} parent=5 // pred_check_branch
        %296 = sbr.rel (%p294) target = $region40
      $region39: #{tpu_custom_call.1} parent=5 // pred_region
        %s297 = ssub.s32 %s14, 2
        // Predicated region
        $region41: #{tpu_custom_call.1} parent=39 // pred_check
          %p298 = pneg %p106
        $region42: #{tpu_custom_call.1} parent=39 // pred_check_branch
          %300 = sbr.rel (%p298) target = $region44
        $region43: #{tpu_custom_call.1} parent=39 // pred_region
          %s301 = sand.u32 %s91, 1
          %s302 = scalar_lea.sflag [#allocation4], %s301
          %s303 = sand.u32 %s91, 1
          %s304 = smul.addr %s303, 8
          %s305 = scalar_lea.vmem [#allocation5], %s304
          %307 = dma.done %s302, 128
        $region44: #{tpu_custom_call.1} parent=39 // pred_fallthru
          _
      $region40: #{tpu_custom_call.1} parent=5 // pred_fallthru
        _
    $region6: #{tpu_custom_call.1} parent=1 // loop_footer
      %s18 = sadd.s32 1, %s14
    $region7: #{tpu_custom_call.1} parent=1 // loop_footer_branch
      %13 = sbr.rel target = $region3
    $region8: #{tpu_custom_call.1} parent=1 // loop_exit
      _
    %308 = vsyncpa [#allocation3], 1
    %s309 = scalar_lea.sflag [#allocation3], 1
    %310 = vsyncpa %s309, 1
    %311 = vsyncpa [#allocation4], 1
    %s312 = scalar_lea.sflag [#allocation4], 1
    %313 = vsyncpa %s312, 1

</llo_original>
